<compile_context>
chip_gen: v5e
topology: v5e:2x2
jax: 0.10.0
libtpu: 0.0.40
codegen_flags: <defaults>
</compile_context>

<pallas_src>
import math

import jax
import jax.numpy as jnp
import numpy as np
from jax.experimental import pallas as pl
from jax.experimental.pallas import tpu as pltpu


def _sinusoidal_kernel(t_ref, f_ref, p_ref, o_ref):
    # t_ref: (TB, 1) or (TB, W); f_ref/p_ref: (1, W); o_ref: (TB, W).
    # Single fused elementwise chain, single full-width lane-dense store.
    o_ref[...] = jnp.sin(t_ref[...] * f_ref[...] + p_ref[...])


def _host_freq_phase(dim: int):
    """Trace-time constants: F = [freqs, freqs], P = [0.., pi/2..] (1, dim)."""
    half = dim // 2
    scale = math.log(10000.0) / (half - 1)
    freqs = np.exp(np.arange(half, dtype=np.float64) * -scale).astype(np.float32)
    f = np.concatenate([freqs, freqs]).reshape(1, dim).astype(np.float32)
    p = np.concatenate(
        [np.zeros(half, np.float32), np.full(half, np.float32(np.pi / 2.0))]
    ).reshape(1, dim)
    return f, p


def _round_up(x: int, m: int) -> int:
    return ((x + m - 1) // m) * m


_TARGET_BLOCK_BYTES = 2 << 20  # ~2 MiB output block (safe on v5e/v6e/v7x VMEM)


def _pick_row_tile(rows: int, width: int) -> int:
    tb = max(8, min(4096, _TARGET_BLOCK_BYTES // (4 * width)))
    tb = _round_up(tb, 8)
    if rows <= tb:
        if rows * width * 4 >= (1 << 20) and rows >= 16:
            # v7x: give the "parallel" grid >= 2 steps so both TCs get work.
            tb = _round_up(-(-rows // 2), 8)
        else:
            # Single block == full array extent (always a legal block shape).
            tb = rows
    return tb


def sinusoidal_position_embeddings(time: jax.Array, dim: int) -> jax.Array:
    """Pallas-TPU equivalent of SinusoidalPositionEmbeddings(dim)(time)."""
    if dim % 2 != 0:
        raise ValueError("SinusoidalPositionEmbeddings requires an even dimension.")
    half = dim // 2
    if half < 2:
        # dim == 2 divides by zero in log(10000)/(half - 1) (latent bug in the
        # original PyTorch module too) -- reject it explicitly.
        raise ValueError("SinusoidalPositionEmbeddings requires dim >= 4.")

    time = time.astype(jnp.float32)
    (b,) = time.shape
    f_np, p_np = _host_freq_phase(dim)

    pack = dim < 128 and (128 % dim == 0)
    if pack:
        # Lane-dense packing: g logical rows per physical row (width == 128).
        g = 128 // dim
        rows = -(-b // g)
        width = g * dim
        t = time
        if rows * g != b:
            t = jnp.pad(t, (0, rows * g - b))  # tiny (b,) pad only
        # Repeat on the XLA side (wrapper), not per-tile in the kernel.
        t_in = jnp.repeat(t.reshape(rows, g), dim, axis=1)  # (rows, 128)
        f = jnp.asarray(np.tile(f_np, (1, g)))
        p = jnp.asarray(np.tile(p_np, (1, g)))
        t_block_w = width
    else:
        rows, width = b, dim
        t_in = time.reshape(b, 1)
        f = jnp.asarray(f_np)
        p = jnp.asarray(p_np)
        t_block_w = 1

    tb = _pick_row_tile(rows, width)
    grid = (-(-rows // tb),)  # partial edge block handled by Pallas masking

    out = pl.pallas_call(
        _sinusoidal_kernel,
        out_shape=jax.ShapeDtypeStruct((rows, width), jnp.float32),
        grid=grid,
        in_specs=[
            pl.BlockSpec((tb, t_block_w), lambda i: (i, 0)),  # time rows
            pl.BlockSpec((1, width), lambda i: (0, 0)),       # F (constant block)
            pl.BlockSpec((1, width), lambda i: (0, 0)),       # P (constant block)
        ],
        out_specs=pl.BlockSpec((tb, width), lambda i: (i, 0)),
        compiler_params=pltpu.CompilerParams(
            dimension_semantics=("parallel",)  # rows independent -> both TCs on v7x
        ),
        cost_estimate=pl.CostEstimate(
            flops=2 * b * dim,
            transcendentals=b * dim,
            bytes_accessed=4 * (b * dim + b + 2 * dim),
        ),
    )(t_in, f, p)

    if pack:
        out = out.reshape(rows * g, dim)  # free: identical memory layout
        if rows * g != b:
            out = out[:b]  # only when b % g != 0 (small tail copy)
    return out


if __name__ == "__main__":
    key = jax.random.PRNGKey(0)
    batch = 8
    dim = 32
    # diffusion-style integer timesteps, cast to float
    time = jax.random.randint(key, (batch,), 0, 1000).astype(jnp.float32)

    emb_fn = jax.jit(sinusoidal_position_embeddings, static_argnames=("dim",))
    out = jax.block_until_ready(emb_fn(time, dim=dim))

    # Reference: exact PyTorch-module semantics in plain JAX.
    half = dim // 2
    scale = math.log(10000.0) / (half - 1)
    freqs = jnp.exp(jnp.arange(half, dtype=jnp.float32) * -scale)
    args = time[:, None] * freqs[None, :]
    ref = jnp.concatenate([jnp.sin(args), jnp.cos(args)], axis=-1)

    assert out.shape == (batch, dim)
    max_err = float(jnp.max(jnp.abs(out - ref)))
    # TPU sin range reduction for args up to ~1e3 + the cos(x)=sin(x+pi/2)
    # fusion differ from the XLA reference by well under 2e-3 (but not 1e-5).
    assert max_err < 2e-3, f"max abs error {max_err}"
    print("KERNEL_OK")
</pallas_src>

<mosaic_0001>
module attributes {stable_mosaic.version = 11 : i64} {
  func.func @_sinusoidal_kernel(%arg0: i32, %arg1: memref<2x128xf32, #tpu.memory_space<vmem>>, %arg2: memref<1x128xf32, #tpu.memory_space<vmem>>, %arg3: memref<1x128xf32, #tpu.memory_space<vmem>>, %arg4: memref<2x128xf32, #tpu.memory_space<vmem>>) attributes {dimension_semantics = [#tpu.dimension_semantics<parallel>], iteration_bounds = array<i64: 1>, scalar_prefetch = 0 : i64, scratch_operands = 0 : i64, tpu.core_type = #tpu.core_type<tc>, window_params = [{transform_indices = @transform_0, window_bounds = array<i64: 2, 128>}, {pipeline_mode = #tpu.pipeline_mode<synchronous>, transform_indices = @transform_1, window_bounds = array<i64: 1, 128>}, {pipeline_mode = #tpu.pipeline_mode<synchronous>, transform_indices = @transform_2, window_bounds = array<i64: 1, 128>}, {transform_indices = @transform_3, window_bounds = array<i64: 2, 128>}]} {
    %c0 = arith.constant 0 : index
    %c0_0 = arith.constant 0 : index
    %0 = vector.load %arg1[%c0, %c0_0] : memref<2x128xf32, #tpu.memory_space<vmem>>, vector<2x128xf32>
    %c0_1 = arith.constant 0 : index
    %c0_2 = arith.constant 0 : index
    %1 = vector.load %arg2[%c0_1, %c0_2] : memref<1x128xf32, #tpu.memory_space<vmem>>, vector<1x128xf32>
    %2 = vector.broadcast %1 : vector<1x128xf32> to vector<2x128xf32>
    %3 = arith.mulf %0, %2 : vector<2x128xf32>
    %c0_3 = arith.constant 0 : index
    %c0_4 = arith.constant 0 : index
    %4 = vector.load %arg3[%c0_3, %c0_4] : memref<1x128xf32, #tpu.memory_space<vmem>>, vector<1x128xf32>
    %5 = vector.broadcast %4 : vector<1x128xf32> to vector<2x128xf32>
    %6 = arith.addf %3, %5 : vector<2x128xf32>
    %7 = math.sin %6 : vector<2x128xf32>
    %c0_5 = arith.constant 0 : index
    %c0_6 = arith.constant 0 : index
    %8 = vector.load %arg4[%c0_5, %c0_6] : memref<2x128xf32, #tpu.memory_space<vmem>>, vector<2x128xf32>
    tpu.vector_store %arg4[%c0_5, %c0_6], %7 {strides = array<i32>} : memref<2x128xf32, #tpu.memory_space<vmem>>, vector<2x128xf32>,
    return
  }
  func.func @transform_0(%arg0: i32) -> (i32, i32) {
    %c0_i32 = arith.constant 0 : i32
    %c0_i32_0 = arith.constant 0 : i32
    return %arg0, %c0_i32 : i32, i32
  }
  func.func @transform_1(%arg0: i32) -> (i32, i32) {
    %c0_i32 = arith.constant 0 : i32
    %c0_i32_0 = arith.constant 0 : i32
    %c0_i32_1 = arith.constant 0 : i32
    return %c0_i32, %c0_i32_0 : i32, i32
  }
  func.func @transform_2(%arg0: i32) -> (i32, i32) {
    %c0_i32 = arith.constant 0 : i32
    %c0_i32_0 = arith.constant 0 : i32
    %c0_i32_1 = arith.constant 0 : i32
    return %c0_i32, %c0_i32_0 : i32, i32
  }
  func.func @transform_3(%arg0: i32) -> (i32, i32) {
    %c0_i32 = arith.constant 0 : i32
    %c0_i32_0 = arith.constant 0 : i32
    return %arg0, %c0_i32 : i32, i32
  }
}

</mosaic_0001>

<llo_original>
// kernel: sinusoidal_position_embeddings.1
$region0: #{sinusoidal_position_embeddings.1}
  #allocation0 [shape = 'u32[]', space=smem, size = 0x4, offset = 0x4, fixed_abs, tag = 'smem constant byte address 0x4 - core index']
  #allocation1 [shape = 'u32[72,128]{1,0:T(1,128)}', space=vmem, size = 0x9000, scoped, tag = 'internal scratch']
  %s0 = inlined_call_operand.vmem [shape: f32[2,128], index: 0, kind: input, shape index: {}]
  %s1 = inlined_call_operand.vmem [shape: f32[1,128], index: 1, kind: input, shape index: {}]
  %s2 = inlined_call_operand.vmem [shape: f32[1,128], index: 2, kind: input, shape index: {}]
  %s3 = inlined_call_operand.vmem [shape: f32[2,128], index: 3, kind: output, shape index: {}]
  %s4 = sld [smem:[#allocation0]]
  $region22: #{sinusoidal_position_embeddings.1} parent=0
    _
  %s6 = ssub.s32 1, %s4
  %s7 = scalar_select 0, %s6, %s4
  // Predicated region
  $region2: #{sinusoidal_position_embeddings.1} parent=0 // pred_check
    _
  $region3: #{sinusoidal_position_embeddings.1} parent=0 // pred_check_branch
    %9 = sbr.rel (0) target = $region5
  $region4: #{sinusoidal_position_embeddings.1} parent=0 // pred_region
    _
  $region5: #{sinusoidal_position_embeddings.1} parent=0 // pred_fallthru
    _
  // Predicated region
  $region6: #{sinusoidal_position_embeddings.1} parent=0 // pred_check
    _
  $region7: #{sinusoidal_position_embeddings.1} parent=0 // pred_check_branch
    %11 = sbr.rel (0) target = $region9
  $region8: #{sinusoidal_position_embeddings.1} parent=0 // pred_region
    _
  $region9: #{sinusoidal_position_embeddings.1} parent=0 // pred_fallthru
    _
  // Predicated region
  $region10: #{sinusoidal_position_embeddings.1} parent=0 // pred_check
    _
  $region11: #{sinusoidal_position_embeddings.1} parent=0 // pred_check_branch
    %13 = sbr.rel (0) target = $region13
  $region12: #{sinusoidal_position_embeddings.1} parent=0 // pred_region
    _
  $region13: #{sinusoidal_position_embeddings.1} parent=0 // pred_fallthru
    _
  %v14 = vld [vmem:[%s0] sm:$0x3]
  %v15 = vld [vmem:[%s1] sm:$0x1]
  %v17 = vperm.slane %v15, 0
  %v19 = vmul.f32 %v14, %v17
  %v20 = vld [vmem:[%s2] sm:$0x1]
  %v22 = vperm.slane %v20, 0
  %v24 = vadd.f32 %v19, %v22
  %v25 = vand.u32 2147483647, %v24
  %vm26 = vcmp.le.f32.partialorder %v25, 0.7853982
  %vm27 = vcmp.lt.s32.totalorder %v24, 0
  %v28 = vand.u32 %v24, 2139095040
  %v29 = vshrl.u32 %v28, 23
  %v30 = vsub.s32 %v29, 127
  %v31 = vand.u32 2147483647, %v24
  %v32 = vand.u32 %v31, 8388607
  %v33 = vor.u32 %v32, 8388608
  %v34 = vsub.s32 0, %v33
  %v35 = vadd.s32 %v30, 1
  %vm36 = vcmp.gt.s32.totalorder %v35, 0
  %v37 = vsel %vm36, %v35, 0
  %v38 = vshrl.u32 %v37, 5
  %v39 = vand.u32 %v37, 31
  %v40 = vsub.s32 32, %v39
  %v41 = vshrl.u32 683565275, %v40
  %v42 = vshll.u32 683565275, %v39
  %v43 = vshrl.u32 2475754826, %v40
  %v44 = vor.u32 %v42, %v43
  %v45 = vshll.u32 2475754826, %v39
  %v46 = vshrl.u32 2131351028, %v40
  %v47 = vor.u32 %v45, %v46
  %v48 = vshll.u32 2131351028, %v39
  %v49 = vshrl.u32 2102212464, %v40
  %v50 = vor.u32 %v48, %v49
  %v51 = vshll.u32 2102212464, %v39
  %v52 = vshrl.u32 920167782, %v40
  %v53 = vor.u32 %v51, %v52
  %v54 = vshll.u32 920167782, %v39
  %v55 = vshrl.u32 1326507024, %v40
  %v56 = vor.u32 %v54, %v55
  %vm57 = vcmp.lt.s32.totalorder %v38, 1
  %vm58 = vcmp.lt.s32.totalorder %v38, 2
  %vm59 = vcmp.lt.s32.totalorder %v38, 3
  %vm60 = vcmp.lt.s32.totalorder %v38, 4
  %v61 = vsel %vm57, %v41, %v44
  %v62 = vsel %vm60, %v50, 2102212464
  %v63 = vsel %vm59, %v47, %v62
  %v64 = vsel %vm58, %v61, %v63
  %v65 = vsel %vm57, %v44, %v47
  %v66 = vsel %vm60, %v53, 920167782
  %v67 = vsel %vm59, %v50, %v66
  %v68 = vsel %vm58, %v65, %v67
  %v69 = vsel %vm57, %v47, %v50
  %v70 = vsel %vm60, %v56, 1326507024
  %v71 = vsel %vm59, %v53, %v70
  %v72 = vsel %vm58, %v69, %v71
  %v73 = vshll.u32 %v33, 8
  %v74 = vand.u32 %v73, 65535
  %v75 = vshrl.u32 %v73, 16
  %v76 = vand.u32 %v72, 65535
  %v77 = vshrl.u32 %v72, 16
  %v78 = vmul.u32 %v74, %v76
  %v79 = vmul.u32 %v74, %v77
  %v80 = vmul.u32 %v75, %v76
  %v81 = vmul.u32 %v75, %v77
  %v82 = vshll.u32 %v79, 16
  %v83 = vshrl.u32 %v79, 16
  %v84 = vshll.u32 %v80, 16
  %v85 = vshrl.u32 %v80, 16
  %vm86 = vc.u32 %v78, %v82
  %v87 = vsel %vm86, 1, 0
  %v88 = vadd.s32 %v78, %v82
  %v89 = vadd.s32 %v81, %v87
  %vm90 = vc.u32 %v88, %v84
  %v91 = vsel %vm90, 1, 0
  %v92 = vadd.s32 %v88, %v84
  %v93 = vadd.s32 %v89, %v91
  %v94 = vadd.s32 %v93, %v83
  %v95 = vadd.s32 %v94, %v85
  %v96 = vand.u32 %v73, 65535
  %v97 = vshrl.u32 %v73, 16
  %v98 = vand.u32 %v68, 65535
  %v99 = vshrl.u32 %v68, 16
  %v100 = vmul.u32 %v96, %v98
  %v101 = vmul.u32 %v96, %v99
  %v102 = vmul.u32 %v97, %v98
  %v103 = vmul.u32 %v97, %v99
  %v104 = vshll.u32 %v101, 16
  %v105 = vshrl.u32 %v101, 16
  %v106 = vshll.u32 %v102, 16
  %v107 = vshrl.u32 %v102, 16
  %vm108 = vc.u32 %v100, %v104
  %v109 = vsel %vm108, 1, 0
  %v110 = vadd.s32 %v100, %v104
  %v111 = vadd.s32 %v103, %v109
  %vm112 = vc.u32 %v110, %v106
  %v113 = vsel %vm112, 1, 0
  %v114 = vadd.s32 %v110, %v106
  %v115 = vadd.s32 %v111, %v113
  %v116 = vadd.s32 %v115, %v105
  %v117 = vadd.s32 %v116, %v107
  %v118 = vmul.u32 %v73, %v64
  %v119 = vadd.s32 %v95, %v114
  %vm120 = vc.u32 %v95, %v114
  %v121 = vadd.s32 %v117, 1
  %v122 = vsel %vm120, %v121, %v117
  %v123 = vadd.s32 %v118, %v122
  %v124 = vadd.s32 %v123, 536870912
  %v125 = vshrl.u32 %v124, 30
  %v126 = vshll.u32 %v125, 30
  %v127 = vsub.s32 %v123, %v126
  %vm128 = vcmp.lt.s32.totalorder %v127, 0
  %v129 = vsub.s32 0, %v127
  %v130 = vsel %vm128, %v129, %v127
  %v131 = vclz %v130
  %v132 = vsub.s32 %v131, 2
  %vm133 = vcmp.gt.s32.totalorder 0, %v132
  %v134 = vsel %vm133, 0, %v132
  %v135 = vsub.s32 32, %v134
  %v136 = vshll.u32 %v127, %v134
  %v137 = vshrl.u32 %v119, %v135
  %v138 = vor.u32 %v136, %v137
  %v139 = vsub.s32 4294967266, %v134
  %v140 = vadd.s32 %v139, 127
  %v141 = vshll.u32 %v140, 23
  %v142 = vor.u32 4788187, %v141
  %v143 = vand.u32 2147483647, %v142
  %v145 = vcvt.s32.f32 %v138
  %v146 = vmul.f32 %v145, %v143
  %v147 = vxor.u32 %v146, 2147483648
  %v148 = vsel %vm27, %v147, %v146
  %v149 = vsub.s32 4, %v125
  %v150 = vsel %vm27, %v149, %v125
  %v151 = vsel %vm26, %v24, %v148
  %v152 = vsel %vm26, 0, %v150
  %v153 = vmul.f32 %v151, %v151
  %v154 = vmul.f32 %v153, -0.001358992
  %v155 = vadd.f32 %v154, 0.041655596
  %v156 = vmul.f32 %v153, %v155
  %v157 = vadd.f32 %v156, -0.4999988
  %v158 = vmul.f32 %v153, %v157
  %v159 = vadd.f32 1.0, %v158
  %v160 = vmul.f32 %v151, %v151
  %v161 = vmul.f32 %v160, -0.00019511016
  %v162 = vadd.f32 %v161, 0.008332121
  %v163 = vmul.f32 %v160, %v162
  %v164 = vadd.f32 %v163, -0.16666654
  %v165 = vmul.f32 %v160, %v164
  %v166 = vadd.f32 %v165, 1.0
  %v167 = vmul.f32 %v166, %v151
  %vm168 = vweird.f32 %v24
  %v169 = vadd.s32 %v152, 3
  %v170 = vand.u32 %v169, 3
  %vm171 = vcmp.lt.s32.totalorder %v170, 2
  %vm172 = vcmp.eq.s32.totalorder %v170, 0
  %v173 = vxor.u32 %v167, 2147483648
  %v174 = vsel %vm172, %v159, %v173
  %vm175 = vcmp.eq.s32.totalorder %v170, 2
  %v176 = vxor.u32 %v159, 2147483648
  %v177 = vsel %vm175, %v176, %v167
  %v178 = vsel %vm171, %v174, %v177
  %v179 = vsel %vm168, nan, %v178
  %180 = vst [vmem:[%s3] sm:$0x3] %v179
  // Predicated region
  $region14: #{sinusoidal_position_embeddings.1} parent=0 // pred_check
    _
  $region15: #{sinusoidal_position_embeddings.1} parent=0 // pred_check_branch
    %182 = sbr.rel (0) target = $region17
  $region16: #{sinusoidal_position_embeddings.1} parent=0 // pred_region
    _
  $region17: #{sinusoidal_position_embeddings.1} parent=0 // pred_fallthru
    _
  // Predicated region
  $region18: #{sinusoidal_position_embeddings.1} parent=0 // pred_check
    _
  $region19: #{sinusoidal_position_embeddings.1} parent=0 // pred_check_branch
    %184 = sbr.rel (0) target = $region21
  $region20: #{sinusoidal_position_embeddings.1} parent=0 // pred_region
    _
  $region21: #{sinusoidal_position_embeddings.1} parent=0 // pred_fallthru
    _

</llo_original>
